<compile_context>
chip_gen: v5e
topology: v5e:2x2
jax: 0.10.0
libtpu: 0.0.40
codegen_flags: <defaults>
</compile_context>

<pallas_src>
import jax
import jax.numpy as jnp
import numpy as np
from jax.experimental import pallas as pl
from jax.experimental.pallas import tpu as pltpu

OUT_DIM = 10                 # per-modality projection width
N_COLS = 12                  # fused columns: [y (10) | gate logit | y @ w_pre]

F_STOCK, F_FIN, F_MACRO, F_TXT = 5, 16, 21, 768

# Row layout of the packed f32 parameter buffer (8-aligned weight blocks).
W1_OFF = 0                   # rows  0:5   -> fc1 fused weight (5, 12)
W2_OFF = 8                   # rows  8:24  -> fc2 fused weight (16, 12)
W3_OFF = 24                  # rows 24:45  -> fc3 fused weight (21, 12)
B_OFF = 48                   # rows 48..53 -> b1, b2, b3, b_news, b_pol, bp_row
P_ROWS = 56


# ---------------------------------------------------------------------------
# Pallas kernel: 5 projection matmuls + gated token reduction, VMEM-resident.
# ---------------------------------------------------------------------------
def attention_graph_kernel(stock_ref, fin_ref, macro_ref, news_ref, pol_ref,
                           p_ref, wbig_ref, out_ref):
    B = out_ref.shape[0]

    def proj(x_ref, w, b_row):
        # bf16 cast in-kernel (free VPU op) -> guaranteed single-pass MXU.
        y = jnp.dot(x_ref[...].astype(jnp.bfloat16), w.astype(jnp.bfloat16),
                    preferred_element_type=jnp.float32)
        return y + b_row                                    # (rows, 12) f32

    def gated(y):
        # fused gate logit lives in column 10
        return y * jax.nn.sigmoid(y[:, OUT_DIM:OUT_DIM + 1])

    def reduce_tokens(g):
        # (B*T, 12) -> (B, 12): sum each batch row's tokens via a one-hot
        # matmul on the MXU (no non-8-aligned reshape / strided sublane sum).
        t = g.shape[0] // B
        rows = jax.lax.broadcasted_iota(jnp.int32, (B, B * t), 0)
        cols = jax.lax.broadcasted_iota(jnp.int32, (B, B * t), 1)
        onehot = jnp.where((cols >= rows * t) & (cols < (rows + 1) * t),
                           1.0, 0.0).astype(jnp.float32)
        return jnp.dot(onehot, g, preferred_element_type=jnp.float32)

    y_stock = proj(stock_ref, p_ref[W1_OFF:W1_OFF + F_STOCK, :],
                   p_ref[B_OFF + 0:B_OFF + 1, :])
    y_fin = proj(fin_ref, p_ref[W2_OFF:W2_OFF + F_FIN, :],
                 p_ref[B_OFF + 1:B_OFF + 2, :])
    y_macro = proj(macro_ref, p_ref[W3_OFF:W3_OFF + F_MACRO, :],
                   p_ref[B_OFF + 2:B_OFF + 3, :])
    y_news = proj(news_ref, wbig_ref[0], p_ref[B_OFF + 3:B_OFF + 4, :])
    y_pol = proj(pol_ref, wbig_ref[1], p_ref[B_OFF + 4:B_OFF + 5, :])

    # Merge modalities that share a token count so one one-hot reduction
    # covers them (trace-time grouping; fully general if counts differ).
    buckets = {}
    for g in (gated(y_stock), gated(y_fin), gated(y_macro),
              gated(y_news), gated(y_pol)):
        k = g.shape[0]
        buckets[k] = g if k not in buckets else buckets[k] + g

    red = sum(reduce_tokens(g) for g in buckets.values())   # (B, 12)

    # bp_row is zero everywhere except column 11 (the pre-head bias), added
    # once per batch row.  Column 10 of the output is the gate-logit channel
    # and is discarded by the wrapper.
    out_ref[...] = red + p_ref[B_OFF + 5:B_OFF + 6, :]


# ---------------------------------------------------------------------------
# Wrapper: free flat reshapes + pallas_call (no host-side layout fusions).
# ---------------------------------------------------------------------------
@jax.jit
def attention_graph(stock, financial, macro, news, policy, p_small, w_big):
    B = stock.shape[0]
    modalities = (stock, financial, macro, news, policy)

    def flat(x):                                   # contiguous -> free reshape
        return x.reshape(x.shape[0] * x.shape[1], x.shape[2])

    n_tok = sum(int(x.shape[1]) for x in modalities)
    flops = 2 * N_COLS * sum(int(x.size) for x in modalities)
    bytes_accessed = (sum(int(x.size) * 4 for x in modalities)
                      + int(p_small.size) * 4 + int(w_big.size) * 2
                      + B * N_COLS * 4)

    vmem = pl.BlockSpec(memory_space=pltpu.MemorySpace.VMEM)
    out = pl.pallas_call(
        attention_graph_kernel,
        out_shape=jax.ShapeDtypeStruct((B, N_COLS), jnp.float32),
        in_specs=[vmem] * 7,
        out_specs=vmem,
        cost_estimate=pl.CostEstimate(flops=flops,
                                      transcendentals=B * n_tok,
                                      bytes_accessed=bytes_accessed),
    )(flat(stock), flat(financial), flat(macro), flat(news), flat(policy),
      p_small, w_big)

    weighted_sum = out[:, :OUT_DIM]
    predict = out[:, OUT_DIM + 1:OUT_DIM + 2]
    return weighted_sum, predict


# ---------------------------------------------------------------------------
# Host-side parameter fusion + packing (done once, in float64 numpy, exact).
# ---------------------------------------------------------------------------
def pack_params(params):
    p = [np.asarray(a, dtype=np.float64) for a in params]
    w = p[0:10:2]            # fc1..fc5 weights, each (F_i, 10)
    b = p[1:10:2]            # fc1..fc5 biases,  each (1, 10)
    wc, bc, wp, bp = p[10], p[11], p[12], p[13]

    def fuse(wi, bi):
        # columns: [y (10) | gate logit | y @ pre]
        wf = np.concatenate([wi, wi @ wc, wi @ wp], axis=1)          # (F_i, 12)
        bf = np.concatenate([bi, bi @ wc + bc, bi @ wp], axis=1)     # (1, 12)
        return wf, bf

    fused = [fuse(wi, bi) for wi, bi in zip(w, b)]

    p_small = np.zeros((P_ROWS, N_COLS), dtype=np.float64)
    p_small[W1_OFF:W1_OFF + F_STOCK] = fused[0][0]
    p_small[W2_OFF:W2_OFF + F_FIN] = fused[1][0]
    p_small[W3_OFF:W3_OFF + F_MACRO] = fused[2][0]
    for i in range(5):
        p_small[B_OFF + i] = fused[i][1][0]
    p_small[B_OFF + 5, OUT_DIM + 1] = bp[0, 0]      # pre-head bias, col 11 only

    w_big = np.stack([fused[3][0], fused[4][0]], axis=0)             # (2,768,12)

    return (jnp.asarray(p_small, jnp.float32),
            jnp.asarray(w_big, jnp.bfloat16))        # MXU operand only


# ---------------------------------------------------------------------------
# Deterministic parameter init (PyTorch nn.Linear-style uniform fan-in init)
# ---------------------------------------------------------------------------
def init_params(key):
    layer_dims = [(5, 10), (16, 10), (21, 10), (768, 10), (768, 10),
                  (10, 1), (10, 1)]  # fc1..fc5, count, pre
    params = []
    for fan_in, fan_out in layer_dims:
        key, kw, kb = jax.random.split(key, 3)
        bound = 1.0 / np.sqrt(fan_in)
        w = jax.random.uniform(kw, (fan_in, fan_out), jnp.float32, -bound, bound)
        b = jax.random.uniform(kb, (1, fan_out), jnp.float32, -bound, bound)
        params += [w, b]
    return tuple(params)  # (w1,b1, ..., w5,b5, wc,bc, wp,bp)


# ---------------------------------------------------------------------------
# Pure-numpy float64 reference (matches the PyTorch forward exactly)
# ---------------------------------------------------------------------------
def reference(stock, financial, macro, news, policy, params):
    p = [np.asarray(a, dtype=np.float64) for a in params]
    xs = [np.asarray(a, dtype=np.float64)
          for a in (stock, financial, macro, news, policy)]
    ys = [xs[i] @ p[2 * i] + p[2 * i + 1] for i in range(5)]
    total = np.concatenate(ys, axis=1)                        # (B, 13, 10)
    wc, bc, wp, bp = p[10], p[11], p[12], p[13]
    att = 1.0 / (1.0 + np.exp(-(total @ wc + bc)))            # (B, 13, 1)
    ws = np.sum(total * att, axis=1)                          # (B, 10)
    pred = ws @ wp + bp                                       # (B, 1)
    return ws.astype(np.float32), pred.astype(np.float32)


if __name__ == "__main__":
    key = jax.random.PRNGKey(0)
    kp, ks, kf, km, kn, kpo = jax.random.split(key, 6)

    B = 2
    stock     = jax.random.normal(ks,  (B, 3, 5),   jnp.float32)
    financial = jax.random.normal(kf,  (B, 3, 16),  jnp.float32)
    macro     = jax.random.normal(km,  (B, 3, 21),  jnp.float32)
    news      = jax.random.normal(kn,  (B, 2, 768), jnp.float32)
    policy    = jax.random.normal(kpo, (B, 2, 768), jnp.float32)
    params = init_params(kp)
    p_small, w_big = pack_params(params)

    ws, pred = attention_graph(stock, financial, macro, news, policy,
                               p_small, w_big)
    jax.block_until_ready((ws, pred))

    ws_ref, pred_ref = reference(stock, financial, macro, news, policy, params)
    # Single-pass bf16 MXU for the 768-wide projections -> ~1e-3..1e-2 error;
    # keep f32 inputs (multi-pass MXU, negligible cost here) if tighter
    # accuracy is ever needed.
    np.testing.assert_allclose(np.asarray(ws), ws_ref, rtol=2e-2, atol=2e-2)
    np.testing.assert_allclose(np.asarray(pred), pred_ref, rtol=2e-2, atol=2e-2)

    print("KERNEL_OK")
</pallas_src>

<mosaic_0001>
module attributes {stable_mosaic.version = 11 : i64} {
  func.func @attention_graph_kernel(%arg0: memref<6x5xf32, #tpu.memory_space<vmem>>, %arg1: memref<6x16xf32, #tpu.memory_space<vmem>>, %arg2: memref<6x21xf32, #tpu.memory_space<vmem>>, %arg3: memref<4x768xf32, #tpu.memory_space<vmem>>, %arg4: memref<4x768xf32, #tpu.memory_space<vmem>>, %arg5: memref<56x12xf32, #tpu.memory_space<vmem>>, %arg6: memref<2x768x12xbf16, #tpu.memory_space<vmem>>, %arg7: memref<2x12xf32, #tpu.memory_space<vmem>>) attributes {dimension_semantics = [], scalar_prefetch = 0 : i64, scratch_operands = 0 : i64, tpu.core_type = #tpu.core_type<tc>} {
    %c0 = arith.constant 0 : index
    %c0_0 = arith.constant 0 : index
    %0 = vector.load %arg5[%c0, %c0_0] : memref<56x12xf32, #tpu.memory_space<vmem>>, vector<5x12xf32>
    %c48 = arith.constant 48 : index
    %c0_1 = arith.constant 0 : index
    %1 = vector.load %arg5[%c48, %c0_1] : memref<56x12xf32, #tpu.memory_space<vmem>>, vector<1x12xf32>
    %c0_2 = arith.constant 0 : index
    %c0_3 = arith.constant 0 : index
    %2 = vector.load %arg0[%c0_2, %c0_3] : memref<6x5xf32, #tpu.memory_space<vmem>>, vector<6x5xf32>
    %3 = arith.truncf %2 : vector<6x5xf32> to vector<6x5xbf16>
    %4 = arith.truncf %0 : vector<5x12xf32> to vector<5x12xbf16>
    %cst = arith.constant dense<0.000000e+00> : vector<6x12xf32>
    %5 = tpu.matmul %3, %4, %cst {dimension_numbers = #tpu.dot_dimension_numbers<[1], [0], [0], [1], [0, 0, 1, 1], [], []>} : vector<6x5xbf16>, vector<5x12xbf16>, vector<6x12xf32> -> vector<6x12xf32>
    %6 = vector.broadcast %1 : vector<1x12xf32> to vector<6x12xf32>
    %7 = arith.addf %5, %6 : vector<6x12xf32>
    %c8 = arith.constant 8 : index
    %c0_4 = arith.constant 0 : index
    %8 = vector.load %arg5[%c8, %c0_4] : memref<56x12xf32, #tpu.memory_space<vmem>>, vector<16x12xf32>
    %c49 = arith.constant 49 : index
    %c0_5 = arith.constant 0 : index
    %9 = vector.load %arg5[%c49, %c0_5] : memref<56x12xf32, #tpu.memory_space<vmem>>, vector<1x12xf32>
    %c0_6 = arith.constant 0 : index
    %c0_7 = arith.constant 0 : index
    %10 = vector.load %arg1[%c0_6, %c0_7] : memref<6x16xf32, #tpu.memory_space<vmem>>, vector<6x16xf32>
    %11 = arith.truncf %10 : vector<6x16xf32> to vector<6x16xbf16>
    %12 = arith.truncf %8 : vector<16x12xf32> to vector<16x12xbf16>
    %cst_8 = arith.constant dense<0.000000e+00> : vector<6x12xf32>
    %13 = tpu.matmul %11, %12, %cst_8 {dimension_numbers = #tpu.dot_dimension_numbers<[1], [0], [0], [1], [0, 0, 1, 1], [], []>} : vector<6x16xbf16>, vector<16x12xbf16>, vector<6x12xf32> -> vector<6x12xf32>
    %14 = vector.broadcast %9 : vector<1x12xf32> to vector<6x12xf32>
    %15 = arith.addf %13, %14 : vector<6x12xf32>
    %c24 = arith.constant 24 : index
    %c0_9 = arith.constant 0 : index
    %16 = vector.load %arg5[%c24, %c0_9] : memref<56x12xf32, #tpu.memory_space<vmem>>, vector<21x12xf32>
    %c50 = arith.constant 50 : index
    %c0_10 = arith.constant 0 : index
    %17 = vector.load %arg5[%c50, %c0_10] : memref<56x12xf32, #tpu.memory_space<vmem>>, vector<1x12xf32>
    %c0_11 = arith.constant 0 : index
    %c0_12 = arith.constant 0 : index
    %18 = vector.load %arg2[%c0_11, %c0_12] : memref<6x21xf32, #tpu.memory_space<vmem>>, vector<6x21xf32>
    %19 = arith.truncf %18 : vector<6x21xf32> to vector<6x21xbf16>
    %20 = arith.truncf %16 : vector<21x12xf32> to vector<21x12xbf16>
    %cst_13 = arith.constant dense<0.000000e+00> : vector<6x12xf32>
    %21 = tpu.matmul %19, %20, %cst_13 {dimension_numbers = #tpu.dot_dimension_numbers<[1], [0], [0], [1], [0, 0, 1, 1], [], []>} : vector<6x21xbf16>, vector<21x12xbf16>, vector<6x12xf32> -> vector<6x12xf32>
    %22 = vector.broadcast %17 : vector<1x12xf32> to vector<6x12xf32>
    %23 = arith.addf %21, %22 : vector<6x12xf32>
    %c0_14 = arith.constant 0 : index
    %c0_15 = arith.constant 0 : index
    %c0_16 = arith.constant 0 : index
    %24 = vector.load %arg6[%c0_14, %c0_15, %c0_16] : memref<2x768x12xbf16, #tpu.memory_space<vmem>>, vector<1x768x12xbf16>
    %25 = vector.shape_cast %24 : vector<1x768x12xbf16> to vector<768x12xbf16>
    %c51 = arith.constant 51 : index
    %c0_17 = arith.constant 0 : index
    %26 = vector.load %arg5[%c51, %c0_17] : memref<56x12xf32, #tpu.memory_space<vmem>>, vector<1x12xf32>
    %c0_18 = arith.constant 0 : index
    %c0_19 = arith.constant 0 : index
    %27 = vector.load %arg3[%c0_18, %c0_19] : memref<4x768xf32, #tpu.memory_space<vmem>>, vector<4x768xf32>
    %28 = arith.truncf %27 : vector<4x768xf32> to vector<4x768xbf16>
    %cst_20 = arith.constant dense<0.000000e+00> : vector<4x12xf32>
    %29 = tpu.matmul %28, %25, %cst_20 {dimension_numbers = #tpu.dot_dimension_numbers<[1], [0], [0], [1], [0, 0, 1, 1], [], []>} : vector<4x768xbf16>, vector<768x12xbf16>, vector<4x12xf32> -> vector<4x12xf32>
    %30 = vector.broadcast %26 : vector<1x12xf32> to vector<4x12xf32>
    %31 = arith.addf %29, %30 : vector<4x12xf32>
    %c1 = arith.constant 1 : index
    %c0_21 = arith.constant 0 : index
    %c0_22 = arith.constant 0 : index
    %32 = vector.load %arg6[%c1, %c0_21, %c0_22] : memref<2x768x12xbf16, #tpu.memory_space<vmem>>, vector<1x768x12xbf16>
    %33 = vector.shape_cast %32 : vector<1x768x12xbf16> to vector<768x12xbf16>
    %c52 = arith.constant 52 : index
    %c0_23 = arith.constant 0 : index
    %34 = vector.load %arg5[%c52, %c0_23] : memref<56x12xf32, #tpu.memory_space<vmem>>, vector<1x12xf32>
    %c0_24 = arith.constant 0 : index
    %c0_25 = arith.constant 0 : index
    %35 = vector.load %arg4[%c0_24, %c0_25] : memref<4x768xf32, #tpu.memory_space<vmem>>, vector<4x768xf32>
    %36 = arith.truncf %35 : vector<4x768xf32> to vector<4x768xbf16>
    %cst_26 = arith.constant dense<0.000000e+00> : vector<4x12xf32>
    %37 = tpu.matmul %36, %33, %cst_26 {dimension_numbers = #tpu.dot_dimension_numbers<[1], [0], [0], [1], [0, 0, 1, 1], [], []>} : vector<4x768xbf16>, vector<768x12xbf16>, vector<4x12xf32> -> vector<4x12xf32>
    %38 = vector.broadcast %34 : vector<1x12xf32> to vector<4x12xf32>
    %39 = arith.addf %37, %38 : vector<4x12xf32>
    %40 = vector.extract_strided_slice %7 {offsets = [0, 10], sizes = [6, 1], strides = [1, 1]} : vector<6x12xf32> to vector<6x1xf32>
    %41 = arith.negf %40 : vector<6x1xf32>
    %42 = math.exp %41 : vector<6x1xf32>
    %cst_27 = arith.constant 1.000000e+00 : f32
    %43 = vector.broadcast %cst_27 : f32 to vector<6x1xf32>
    %44 = arith.addf %43, %42 : vector<6x1xf32>
    %45 = arith.divf %43, %44 : vector<6x1xf32>
    %46 = vector.broadcast %45 : vector<6x1xf32> to vector<6x12xf32>
    %47 = arith.mulf %7, %46 : vector<6x12xf32>
    %48 = vector.extract_strided_slice %15 {offsets = [0, 10], sizes = [6, 1], strides = [1, 1]} : vector<6x12xf32> to vector<6x1xf32>
    %49 = arith.negf %48 : vector<6x1xf32>
    %50 = math.exp %49 : vector<6x1xf32>
    %cst_28 = arith.constant 1.000000e+00 : f32
    %51 = vector.broadcast %cst_28 : f32 to vector<6x1xf32>
    %52 = arith.addf %51, %50 : vector<6x1xf32>
    %53 = arith.divf %51, %52 : vector<6x1xf32>
    %54 = vector.broadcast %53 : vector<6x1xf32> to vector<6x12xf32>
    %55 = arith.mulf %15, %54 : vector<6x12xf32>
    %56 = vector.extract_strided_slice %23 {offsets = [0, 10], sizes = [6, 1], strides = [1, 1]} : vector<6x12xf32> to vector<6x1xf32>
    %57 = arith.negf %56 : vector<6x1xf32>
    %58 = math.exp %57 : vector<6x1xf32>
    %cst_29 = arith.constant 1.000000e+00 : f32
    %59 = vector.broadcast %cst_29 : f32 to vector<6x1xf32>
    %60 = arith.addf %59, %58 : vector<6x1xf32>
    %61 = arith.divf %59, %60 : vector<6x1xf32>
    %62 = vector.broadcast %61 : vector<6x1xf32> to vector<6x12xf32>
    %63 = arith.mulf %23, %62 : vector<6x12xf32>
    %64 = vector.extract_strided_slice %31 {offsets = [0, 10], sizes = [4, 1], strides = [1, 1]} : vector<4x12xf32> to vector<4x1xf32>
    %65 = arith.negf %64 : vector<4x1xf32>
    %66 = math.exp %65 : vector<4x1xf32>
    %cst_30 = arith.constant 1.000000e+00 : f32
    %67 = vector.broadcast %cst_30 : f32 to vector<4x1xf32>
    %68 = arith.addf %67, %66 : vector<4x1xf32>
    %69 = arith.divf %67, %68 : vector<4x1xf32>
    %70 = vector.broadcast %69 : vector<4x1xf32> to vector<4x12xf32>
    %71 = arith.mulf %31, %70 : vector<4x12xf32>
    %72 = vector.extract_strided_slice %39 {offsets = [0, 10], sizes = [4, 1], strides = [1, 1]} : vector<4x12xf32> to vector<4x1xf32>
    %73 = arith.negf %72 : vector<4x1xf32>
    %74 = math.exp %73 : vector<4x1xf32>
    %cst_31 = arith.constant 1.000000e+00 : f32
    %75 = vector.broadcast %cst_31 : f32 to vector<4x1xf32>
    %76 = arith.addf %75, %74 : vector<4x1xf32>
    %77 = arith.divf %75, %76 : vector<4x1xf32>
    %78 = vector.broadcast %77 : vector<4x1xf32> to vector<4x12xf32>
    %79 = arith.mulf %39, %78 : vector<4x12xf32>
    %80 = arith.addf %47, %55 : vector<6x12xf32>
    %81 = arith.addf %80, %63 : vector<6x12xf32>
    %82 = arith.addf %71, %79 : vector<4x12xf32>
    %83 = tpu.iota {dimensions = array<i32: 0>} : vector<2x6xi32>
    %84 = tpu.iota {dimensions = array<i32: 1>} : vector<2x6xi32>
    %c3_i32 = arith.constant 3 : i32
    %85 = vector.broadcast %c3_i32 : i32 to vector<2x6xi32>
    %86 = arith.muli %83, %85 : vector<2x6xi32>
    %87 = arith.cmpi sge, %84, %86 : vector<2x6xi32>
    %c1_i32 = arith.constant 1 : i32
    %88 = vector.broadcast %c1_i32 : i32 to vector<2x6xi32>
    %89 = arith.addi %83, %88 : vector<2x6xi32>
    %c3_i32_32 = arith.constant 3 : i32
    %90 = vector.broadcast %c3_i32_32 : i32 to vector<2x6xi32>
    %91 = arith.muli %89, %90 : vector<2x6xi32>
    %92 = arith.cmpi slt, %84, %91 : vector<2x6xi32>
    %93 = arith.andi %87, %92 : vector<2x6xi1>
    %cst_33 = arith.constant 1.000000e+00 : f32
    %cst_34 = arith.constant 0.000000e+00 : f32
    %94 = vector.broadcast %cst_33 : f32 to vector<2x6xf32>
    %95 = vector.broadcast %cst_34 : f32 to vector<2x6xf32>
    %96 = arith.select %93, %94, %95 : vector<2x6xi1>, vector<2x6xf32>
    %cst_35 = arith.constant dense<0.000000e+00> : vector<2x12xf32>
    %97 = tpu.matmul %96, %81, %cst_35 {dimension_numbers = #tpu.dot_dimension_numbers<[1], [0], [0], [1], [0, 0, 1, 1], [], []>} : vector<2x6xf32>, vector<6x12xf32>, vector<2x12xf32> -> vector<2x12xf32>
    %cst_36 = arith.constant 0.000000e+00 : f32
    %98 = vector.broadcast %cst_36 : f32 to vector<2x12xf32>
    %99 = arith.addf %98, %97 : vector<2x12xf32>
    %100 = tpu.iota {dimensions = array<i32: 0>} : vector<2x4xi32>
    %101 = tpu.iota {dimensions = array<i32: 1>} : vector<2x4xi32>
    %c2_i32 = arith.constant 2 : i32
    %102 = vector.broadcast %c2_i32 : i32 to vector<2x4xi32>
    %103 = arith.muli %100, %102 : vector<2x4xi32>
    %104 = arith.cmpi sge, %101, %103 : vector<2x4xi32>
    %c1_i32_37 = arith.constant 1 : i32
    %105 = vector.broadcast %c1_i32_37 : i32 to vector<2x4xi32>
    %106 = arith.addi %100, %105 : vector<2x4xi32>
    %c2_i32_38 = arith.constant 2 : i32
    %107 = vector.broadcast %c2_i32_38 : i32 to vector<2x4xi32>
    %108 = arith.muli %106, %107 : vector<2x4xi32>
    %109 = arith.cmpi slt, %101, %108 : vector<2x4xi32>
    %110 = arith.andi %104, %109 : vector<2x4xi1>
    %cst_39 = arith.constant 1.000000e+00 : f32
    %cst_40 = arith.constant 0.000000e+00 : f32
    %111 = vector.broadcast %cst_39 : f32 to vector<2x4xf32>
    %112 = vector.broadcast %cst_40 : f32 to vector<2x4xf32>
    %113 = arith.select %110, %111, %112 : vector<2x4xi1>, vector<2x4xf32>
    %cst_41 = arith.constant dense<0.000000e+00> : vector<2x12xf32>
    %114 = tpu.matmul %113, %82, %cst_41 {dimension_numbers = #tpu.dot_dimension_numbers<[1], [0], [0], [1], [0, 0, 1, 1], [], []>} : vector<2x4xf32>, vector<4x12xf32>, vector<2x12xf32> -> vector<2x12xf32>
    %115 = arith.addf %99, %114 : vector<2x12xf32>
    %c53 = arith.constant 53 : index
    %c0_42 = arith.constant 0 : index
    %116 = vector.load %arg5[%c53, %c0_42] : memref<56x12xf32, #tpu.memory_space<vmem>>, vector<1x12xf32>
    %117 = vector.broadcast %116 : vector<1x12xf32> to vector<2x12xf32>
    %118 = arith.addf %115, %117 : vector<2x12xf32>
    %c0_43 = arith.constant 0 : index
    %c0_44 = arith.constant 0 : index
    %119 = vector.load %arg7[%c0_43, %c0_44] : memref<2x12xf32, #tpu.memory_space<vmem>>, vector<2x12xf32>
    tpu.vector_store %arg7[%c0_43, %c0_44], %118 {strides = array<i32>} : memref<2x12xf32, #tpu.memory_space<vmem>>, vector<2x12xf32>,
    return
  }
}

</mosaic_0001>

<llo_original>
// kernel: attention_graph.1
$region0: #{attention_graph.1}
  #allocation0 [shape = 'u32[]', space=smem, size = 0x4, offset = 0x4, fixed_abs, tag = 'smem constant byte address 0x4 - core index']
  #allocation1 [shape = 'u32[72,128]{1,0:T(1,128)}', space=vmem, size = 0x9000, scoped, tag = 'internal scratch']
  %s0 = inlined_call_operand.vmem [shape: f32[6,5], index: 0, kind: input, shape index: {}]
  %s1 = inlined_call_operand.vmem [shape: f32[6,16], index: 1, kind: input, shape index: {}]
  %s2 = inlined_call_operand.vmem [shape: f32[6,21], index: 2, kind: input, shape index: {}]
  %s3 = inlined_call_operand.vmem [shape: f32[4,768], index: 3, kind: input, shape index: {}]
  %s4 = inlined_call_operand.vmem [shape: f32[4,768], index: 4, kind: input, shape index: {}]
  %s5 = inlined_call_operand.vmem [shape: f32[56,12], index: 5, kind: input, shape index: {}]
  %s6 = inlined_call_operand.vmem [shape: bf16[2,768,12], index: 6, kind: input, shape index: {}]
  %s7 = inlined_call_operand.vmem [shape: f32[2,12], index: 7, kind: output, shape index: {}]
  %s8 = sld [smem:[#allocation0]]
  $region38: #{attention_graph.1} parent=0
    _
  %s10 = ssub.s32 1, %s8
  %s11 = scalar_select 0, %s10, %s8
  // Predicated region
  $region2: #{attention_graph.1} parent=0 // pred_check
    _
  $region3: #{attention_graph.1} parent=0 // pred_check_branch
    %13 = sbr.rel (0) target = $region5
  $region4: #{attention_graph.1} parent=0 // pred_region
    _
  $region5: #{attention_graph.1} parent=0 // pred_fallthru
    _
  // Predicated region
  $region6: #{attention_graph.1} parent=0 // pred_check
    _
  $region7: #{attention_graph.1} parent=0 // pred_check_branch
    %15 = sbr.rel (0) target = $region9
  $region8: #{attention_graph.1} parent=0 // pred_region
    _
  $region9: #{attention_graph.1} parent=0 // pred_fallthru
    _
  // Predicated region
  $region10: #{attention_graph.1} parent=0 // pred_check
    _
  $region11: #{attention_graph.1} parent=0 // pred_check_branch
    %17 = sbr.rel (0) target = $region13
  $region12: #{attention_graph.1} parent=0 // pred_region
    _
  $region13: #{attention_graph.1} parent=0 // pred_fallthru
    _
  // Predicated region
  $region14: #{attention_graph.1} parent=0 // pred_check
    _
  $region15: #{attention_graph.1} parent=0 // pred_check_branch
    %19 = sbr.rel (0) target = $region17
  $region16: #{attention_graph.1} parent=0 // pred_region
    _
  $region17: #{attention_graph.1} parent=0 // pred_fallthru
    _
  // Predicated region
  $region18: #{attention_graph.1} parent=0 // pred_check
    _
  $region19: #{attention_graph.1} parent=0 // pred_check_branch
    %21 = sbr.rel (0) target = $region21
  $region20: #{attention_graph.1} parent=0 // pred_region
    _
  $region21: #{attention_graph.1} parent=0 // pred_fallthru
    _
  // Predicated region
  $region22: #{attention_graph.1} parent=0 // pred_check
    _
  $region23: #{attention_graph.1} parent=0 // pred_check_branch
    %23 = sbr.rel (0) target = $region25
  $region24: #{attention_graph.1} parent=0 // pred_region
    _
  $region25: #{attention_graph.1} parent=0 // pred_fallthru
    _
  // Predicated region
  $region26: #{attention_graph.1} parent=0 // pred_check
    _
  $region27: #{attention_graph.1} parent=0 // pred_check_branch
    %25 = sbr.rel (0) target = $region29
  $region28: #{attention_graph.1} parent=0 // pred_region
    _
  $region29: #{attention_graph.1} parent=0 // pred_fallthru
    _
  %v27 = vld [vmem:[%s5] sm:$0x1f]
  %v28 = vld [vmem:[%s5 + $0x30] sm:$0x1]
  %v29 = vld [vmem:[%s0] sm:$0x3f]
  %v30 = vpack.c.bf16 %v29, %v29
  %v31 = vpack.c.bf16 %v27, %v27
  %v32 = vperm.slane %v28, 0
  %vm33 = vcmask 39936
  %v35 = vsel %vm33, %v30, 0
  %vm37 = vcmask 1041408
  %vm38 = vcmask 1042432
  %v39 = vsel %vm37, 4294967295, 65535
  %v40 = vsel %vm38, %v39, 0
  %v42 = vand.u32 %v31, %v40
  %44 = vmatpush.bf16.msra.mxu0 0
  %45 = vmatpush.bf16.msra.mxu0 0
  %46 = vmatpush.bf16.msra.mxu0 0
  %47 = vmatpush.bf16.msra.mxu0 0
  %48 = vmatpush.bf16.msra.mxu0 0
  %49 = vmatpush.bf16.msra.mxu0 0
  %50 = vmatpush.bf16.msra.mxu0 0
  %51 = vmatpush.bf16.msra.mxu0 %v42
  %52 = vmatmul.bf16.gmra.mxu0 %v35
  %v53 = vpop.f32.mrf.mxu0
  %v54 = vadd.f32 %v32, %v53
  %v55 = vpop.f32.mrf.mxu0
  %56 = vdwg.mxu0
  %v57 = vld [vmem:[%s5 + $0x8] sm:$0xff]
  %v58 = vld [vmem:[%s5 + $0x10] sm:$0xff]
  %v59 = vld [vmem:[%s5 + $0x31] sm:$0x1]
  %v60 = vld [vmem:[%s1] sm:$0x3f]
  %v61 = vpack.c.bf16 %v60, %v60
  %v62 = vpack.c.bf16 %v58, %v57
  %v63 = vperm.slane %v59, 0
  %vm64 = vcmask 130048
  %v66 = vsel %vm64, %v61, 0
  %68 = vmatpush.bf16.msra.mxu0 0
  %69 = vmatpush.bf16.msra.mxu0 0
  %70 = vmatpush.bf16.msra.mxu0 0
  %71 = vmatpush.bf16.msra.mxu0 0
  %72 = vmatpush.bf16.msra.mxu0 0
  %73 = vmatpush.bf16.msra.mxu0 0
  %74 = vmatpush.bf16.msra.mxu0 0
  %75 = vmatpush.bf16.msra.mxu0 %v62
  %76 = vmatmul.bf16.gmra.mxu0 %v66
  %v77 = vpop.f32.mrf.mxu0
  %v78 = vadd.f32 %v63, %v77
  %v79 = vpop.f32.mrf.mxu0
  %80 = vdwg.mxu0
  %v81 = vld [vmem:[%s5 + $0x18] sm:$0xff]
  %v82 = vld [vmem:[%s5 + $0x20] sm:$0xff]
  %v83 = vld [vmem:[%s5 + $0x28] sm:$0x1f]
  %v84 = vld [vmem:[%s5 + $0x32] sm:$0x1]
  %v85 = vld [vmem:[%s2] sm:$0x3f]
  %v86 = vpack.c.bf16 %v85, %v85
  %v87 = vpack.c.bf16 %v82, %v81
  %v88 = vpack.c.bf16 %v83, %v83
  %v89 = vperm.slane %v84, 0
  %vm90 = vcmask 171008
  %v92 = vsel %vm90, %v86, 0
  %v95 = vand.u32 %v88, %v40
  %97 = vmatpush.bf16.msra.mxu0 0
  %98 = vmatpush.bf16.msra.mxu0 0
  %99 = vmatpush.bf16.msra.mxu0 0
  %100 = vmatpush.bf16.msra.mxu0 0
  %101 = vmatpush.bf16.msra.mxu0 0
  %102 = vmatpush.bf16.msra.mxu0 0
  %103 = vmatpush.bf16.msra.mxu0 %v95
  %104 = vmatpush.bf16.msra.mxu0 %v87
  %105 = vmatmul.bf16.gmra.mxu0 %v92
  %v106 = vpop.f32.mrf.mxu0
  %v107 = vadd.f32 %v89, %v106
  %v108 = vpop.f32.mrf.mxu0
  %109 = vdwg.mxu0
  %v110 = vld [vmem:[%s6] sm:$0xf]
  %v111 = vld [vmem:[%s6 + $0x4] sm:$0xf]
  %v112 = vld [vmem:[%s6 + $0x8] sm:$0xf]
  %v113 = vld [vmem:[%s6 + $0xc] sm:$0xf]
  %v114 = vld [vmem:[%s6 + $0x10] sm:$0xf]
  %v115 = vld [vmem:[%s6 + $0x14] sm:$0xf]
  %v116 = vld [vmem:[%s6 + $0x18] sm:$0xf]
  %v117 = vld [vmem:[%s6 + $0x1c] sm:$0xf]
  %v118 = vld [vmem:[%s6 + $0x20] sm:$0xf]
  %v119 = vld [vmem:[%s6 + $0x24] sm:$0xf]
  %v120 = vld [vmem:[%s6 + $0x28] sm:$0xf]
  %v121 = vld [vmem:[%s6 + $0x2c] sm:$0xf]
  %v122 = vld [vmem:[%s6 + $0x30] sm:$0xf]
  %v123 = vld [vmem:[%s6 + $0x34] sm:$0xf]
  %v124 = vld [vmem:[%s6 + $0x38] sm:$0xf]
  %v125 = vld [vmem:[%s6 + $0x3c] sm:$0xf]
  %v126 = vld [vmem:[%s6 + $0x40] sm:$0xf]
  %v127 = vld [vmem:[%s6 + $0x44] sm:$0xf]
  %v128 = vld [vmem:[%s6 + $0x48] sm:$0xf]
  %v129 = vld [vmem:[%s6 + $0x4c] sm:$0xf]
  %v130 = vld [vmem:[%s6 + $0x50] sm:$0xf]
  %v131 = vld [vmem:[%s6 + $0x54] sm:$0xf]
  %v132 = vld [vmem:[%s6 + $0x58] sm:$0xf]
  %v133 = vld [vmem:[%s6 + $0x5c] sm:$0xf]
  %v134 = vld [vmem:[%s6 + $0x60] sm:$0xf]
  %v135 = vld [vmem:[%s6 + $0x64] sm:$0xf]
  %v136 = vld [vmem:[%s6 + $0x68] sm:$0xf]
  %v137 = vld [vmem:[%s6 + $0x6c] sm:$0xf]
  %v138 = vld [vmem:[%s6 + $0x70] sm:$0xf]
  %v139 = vld [vmem:[%s6 + $0x74] sm:$0xf]
  %v140 = vld [vmem:[%s6 + $0x78] sm:$0xf]
  %v141 = vld [vmem:[%s6 + $0x7c] sm:$0xf]
  %v142 = vld [vmem:[%s6 + $0x80] sm:$0xf]
  %v143 = vld [vmem:[%s6 + $0x84] sm:$0xf]
  %v144 = vld [vmem:[%s6 + $0x88] sm:$0xf]
  %v145 = vld [vmem:[%s6 + $0x8c] sm:$0xf]
  %v146 = vld [vmem:[%s6 + $0x90] sm:$0xf]
  %v147 = vld [vmem:[%s6 + $0x94] sm:$0xf]
  %v148 = vld [vmem:[%s6 + $0x98] sm:$0xf]
  %v149 = vld [vmem:[%s6 + $0x9c] sm:$0xf]
  %v150 = vld [vmem:[%s6 + $0xa0] sm:$0xf]
  %v151 = vld [vmem:[%s6 + $0xa4] sm:$0xf]
  %v152 = vld [vmem:[%s6 + $0xa8] sm:$0xf]
  %v153 = vld [vmem:[%s6 + $0xac] sm:$0xf]
  %v154 = vld [vmem:[%s6 + $0xb0] sm:$0xf]
  %v155 = vld [vmem:[%s6 + $0xb4] sm:$0xf]
  %v156 = vld [vmem:[%s6 + $0xb8] sm:$0xf]
  %v157 = vld [vmem:[%s6 + $0xbc] sm:$0xf]
  %v158 = vld [vmem:[%s6 + $0xc0] sm:$0xf]
  %v159 = vld [vmem:[%s6 + $0xc4] sm:$0xf]
  %v160 = vld [vmem:[%s6 + $0xc8] sm:$0xf]
  %v161 = vld [vmem:[%s6 + $0xcc] sm:$0xf]
  %v162 = vld [vmem:[%s6 + $0xd0] sm:$0xf]
  %v163 = vld [vmem:[%s6 + $0xd4] sm:$0xf]
  %v164 = vld [vmem:[%s6 + $0xd8] sm:$0xf]
  %v165 = vld [vmem:[%s6 + $0xdc] sm:$0xf]
  %v166 = vld [vmem:[%s6 + $0xe0] sm:$0xf]
  %v167 = vld [vmem:[%s6 + $0xe4] sm:$0xf]
  %v168 = vld [vmem:[%s6 + $0xe8] sm:$0xf]
  %v169 = vld [vmem:[%s6 + $0xec] sm:$0xf]
  %v170 = vld [vmem:[%s6 + $0xf0] sm:$0xf]
  %v171 = vld [vmem:[%s6 + $0xf4] sm:$0xf]
  %v172 = vld [vmem:[%s6 + $0xf8] sm:$0xf]
  %v173 = vld [vmem:[%s6 + $0xfc] sm:$0xf]
  %v174 = vld [vmem:[%s6 + $0x100] sm:$0xf]
  %v175 = vld [vmem:[%s6 + $0x104] sm:$0xf]
  %v176 = vld [vmem:[%s6 + $0x108] sm:$0xf]
  %v177 = vld [vmem:[%s6 + $0x10c] sm:$0xf]
  %v178 = vld [vmem:[%s6 + $0x110] sm:$0xf]
  %v179 = vld [vmem:[%s6 + $0x114] sm:$0xf]
  %v180 = vld [vmem:[%s6 + $0x118] sm:$0xf]
  %v181 = vld [vmem:[%s6 + $0x11c] sm:$0xf]
  %v182 = vld [vmem:[%s6 + $0x120] sm:$0xf]
  %v183 = vld [vmem:[%s6 + $0x124] sm:$0xf]
  %v184 = vld [vmem:[%s6 + $0x128] sm:$0xf]
  %v185 = vld [vmem:[%s6 + $0x12c] sm:$0xf]
  %v186 = vld [vmem:[%s6 + $0x130] sm:$0xf]
  %v187 = vld [vmem:[%s6 + $0x134] sm:$0xf]
  %v188 = vld [vmem:[%s6 + $0x138] sm:$0xf]
  %v189 = vld [vmem:[%s6 + $0x13c] sm:$0xf]
  %v190 = vld [vmem:[%s6 + $0x140] sm:$0xf]
  %v191 = vld [vmem:[%s6 + $0x144] sm:$0xf]
  %v192 = vld [vmem:[%s6 + $0x148] sm:$0xf]
  %v193 = vld [vmem:[%s6 + $0x14c] sm:$0xf]
  %v194 = vld [vmem:[%s6 + $0x150] sm:$0xf]
  %v195 = vld [vmem:[%s6 + $0x154] sm:$0xf]
  %v196 = vld [vmem:[%s6 + $0x158] sm:$0xf]
  %v197 = vld [vmem:[%s6 + $0x15c] sm:$0xf]
  %v198 = vld [vmem:[%s6 + $0x160] sm:$0xf]
  %v199 = vld [vmem:[%s6 + $0x164] sm:$0xf]
  %v200 = vld [vmem:[%s6 + $0x168] sm:$0xf]
  %v201 = vld [vmem:[%s6 + $0x16c] sm:$0xf]
  %v202 = vld [vmem:[%s6 + $0x170] sm:$0xf]
  %v203 = vld [vmem:[%s6 + $0x174] sm:$0xf]
  %v204 = vld [vmem:[%s6 + $0x178] sm:$0xf]
  %v205 = vld [vmem:[%s6 + $0x17c] sm:$0xf]
  %v206 = vld [vmem:[%s5 + $0x33] sm:$0x1]
  %v207 = vld [vmem:[%s3] sm:$0xff]
  %v208 = vld [vmem:[%s3 + $0x8] sm:$0xff]
  %v209 = vld [vmem:[%s3 + $0x10] sm:$0xff]
  %213 = vst [vmem:[#allocation1] ss:$2 sm:$0xff] %v207
  %s214 = scalar_lea.vmem [#allocation1], 16
  %215 = vst [vmem:[%s214] ss:$2 sm:$0xff] %v208
  %s216 = scalar_lea.vmem [#allocation1], 32
  %217 = vst [vmem:[%s216] ss:$2 sm:$0xff] %v209
  %v218 = vld.sshfl [vmem:[#allocation1] sm:$0xff pattern:$0x75316420]
  %v219 = vld.sshfl [vmem:[#allocation1 + $0x8] sm:$0xff pattern:$0x75316420]
  %v220 = vld.sshfl [vmem:[#allocation1 + $0x10] sm:$0xff pattern:$0x75316420]
  %v221 = vld.sshfl [vmem:[#allocation1 + $0x18] sm:$0xff pattern:$0x75316420]
  %v222 = vld.sshfl [vmem:[#allocation1 + $0x20] sm:$0xff pattern:$0x75316420]
  %v223 = vld.sshfl [vmem:[#allocation1 + $0x28] sm:$0xff pattern:$0x75316420]
  %v230 = vpack.c.bf16 %v218, %v218
  %v231 = vpack.c.bf16 %v219, %v219
  %v232 = vpack.c.bf16 %v220, %v220
  %v233 = vpack.c.bf16 %v221, %v221
  %v234 = vpack.c.bf16 %v222, %v222
  %v235 = vpack.c.bf16 %v223, %v223
  %v236 = vperm.slane %v206, 0
  %v333 = vunpack.c.l.b16 %v110
  %v334 = vunpack.c.l.b16 %v111
  %v335 = vunpack.c.l.b16 %v112
  %v336 = vunpack.c.l.b16 %v113
  %v337 = vunpack.c.l.b16 %v114
  %v338 = vunpack.c.l.b16 %v115
  %v339 = vunpack.c.l.b16 %v116
  %v340 = vunpack.c.l.b16 %v117
  %v341 = vunpack.c.l.b16 %v118
  %v342 = vunpack.c.l.b16 %v119
  %v343 = vunpack.c.l.b16 %v120
  %v344 = vunpack.c.l.b16 %v121
  %v345 = vunpack.c.l.b16 %v122
  %v346 = vunpack.c.l.b16 %v123
  %v347 = vunpack.c.l.b16 %v124
  %v348 = vunpack.c.l.b16 %v125
  %v349 = vunpack.c.l.b16 %v126
  %v350 = vunpack.c.l.b16 %v127
  %v351 = vunpack.c.l.b16 %v128
  %v352 = vunpack.c.l.b16 %v129
  %v353 = vunpack.c.l.b16 %v130
  %v354 = vunpack.c.l.b16 %v131
  %v355 = vunpack.c.l.b16 %v132
  %v356 = vunpack.c.l.b16 %v133
  %v357 = vunpack.c.l.b16 %v134
  %v358 = vunpack.c.l.b16 %v135
  %v359 = vunpack.c.l.b16 %v136
  %v360 = vunpack.c.l.b16 %v137
  %v361 = vunpack.c.l.b16 %v138
  %v362 = vunpack.c.l.b16 %v139
  %v363 = vunpack.c.l.b16 %v140
  %v364 = vunpack.c.l.b16 %v141
  %v365 = vunpack.c.l.b16 %v142
  %v366 = vunpack.c.l.b16 %v143
  %v367 = vunpack.c.l.b16 %v144
  %v368 = vunpack.c.l.b16 %v145
  %v369 = vunpack.c.l.b16 %v146
  %v370 = vunpack.c.l.b16 %v147
  %v371 = vunpack.c.l.b16 %v148
  %v372 = vunpack.c.l.b16 %v149
  %v373 = vunpack.c.l.b16 %v150
  %v374 = vunpack.c.l.b16 %v151
  %v375 = vunpack.c.l.b16 %v152
  %v376 = vunpack.c.l.b16 %v153
  %v377 = vunpack.c.l.b16 %v154
  %v378 = vunpack.c.l.b16 %v155
  %v379 = vunpack.c.l.b16 %v156
  %v380 = vunpack.c.l.b16 %v157
  %v381 = vunpack.c.l.b16 %v158
  %v382 = vunpack.c.l.b16 %v159
  %v383 = vunpack.c.l.b16 %v160
  %v384 = vunpack.c.l.b16 %v161
  %v385 = vunpack.c.l.b16 %v162
  %v386 = vunpack.c.l.b16 %v163
  %v387 = vunpack.c.l.b16 %v164
  %v388 = vunpack.c.l.b16 %v165
  %v389 = vunpack.c.l.b16 %v166
  %v390 = vunpack.c.l.b16 %v167
  %v391 = vunpack.c.l.b16 %v168
  %v392 = vunpack.c.l.b16 %v169
  %v393 = vunpack.c.l.b16 %v170
  %v394 = vunpack.c.l.b16 %v171
  %v395 = vunpack.c.l.b16 %v172
  %v396 = vunpack.c.l.b16 %v173
  %v397 = vunpack.c.l.b16 %v174
  %v398 = vunpack.c.l.b16 %v175
  %v399 = vunpack.c.l.b16 %v176
  %v400 = vunpack.c.l.b16 %v177
  %v401 = vunpack.c.l.b16 %v178
  %v402 = vunpack.c.l.b16 %v179
  %v403 = vunpack.c.l.b16 %v180
  %v404 = vunpack.c.l.b16 %v181
  %v405 = vunpack.c.l.b16 %v182
  %v406 = vunpack.c.l.b16 %v183
  %v407 = vunpack.c.l.b16 %v184
  %v408 = vunpack.c.l.b16 %v185
  %v409 = vunpack.c.l.b16 %v186
  %v410 = vunpack.c.l.b16 %v187
  %v411 = vunpack.c.l.b16 %v188
  %v412 = vunpack.c.l.b16 %v189
  %v413 = vunpack.c.l.b16 %v190
  %v414 = vunpack.c.l.b16 %v191
  %v415 = vunpack.c.l.b16 %v192
  %v416 = vunpack.c.l.b16 %v193
  %v417 = vunpack.c.l.b16 %v194
  %v418 = vunpack.c.l.b16 %v195
  %v419 = vunpack.c.l.b16 %v196
  %v420 = vunpack.c.l.b16 %v197
  %v421 = vunpack.c.l.b16 %v198
  %v422 = vunpack.c.l.b16 %v199
  %v423 = vunpack.c.l.b16 %v200
  %v424 = vunpack.c.l.b16 %v201
  %v425 = vunpack.c.l.b16 %v202
  %v426 = vunpack.c.l.b16 %v203
  %v427 = vunpack.c.l.b16 %v204
  %v428 = vunpack.c.l.b16 %v205
  %v429 = vpack.c.b16 %v334, %v333
  %v430 = vpack.c.b16 %v336, %v335
  %v431 = vpack.c.b16 %v338, %v337
  %v432 = vpack.c.b16 %v340, %v339
  %v433 = vpack.c.b16 %v342, %v341
  %v434 = vpack.c.b16 %v344, %v343
  %v435 = vpack.c.b16 %v346, %v345
  %v436 = vpack.c.b16 %v348, %v347
  %v437 = vpack.c.b16 %v350, %v349
  %v438 = vpack.c.b16 %v352, %v351
  %v439 = vpack.c.b16 %v354, %v353
  %v440 = vpack.c.b16 %v356, %v355
  %v441 = vpack.c.b16 %v358, %v357
  %v442 = vpack.c.b16 %v360, %v359
  %v443 = vpack.c.b16 %v362, %v361
  %v444 = vpack.c.b16 %v364, %v363
  %v445 = vpack.c.b16 %v366, %v365
  %v446 = vpack.c.b16 %v368, %v367
  %v447 = vpack.c.b16 %v370, %v369
  %v448 = vpack.c.b16 %v372, %v371
  %v449 = vpack.c.b16 %v374, %v373
  %v450 = vpack.c.b16 %v376, %v375
  %v451 = vpack.c.b16 %v378, %v377
  %v452 = vpack.c.b16 %v380, %v379
  %v453 = vpack.c.b16 %v382, %v381
  %v454 = vpack.c.b16 %v384, %v383
  %v455 = vpack.c.b16 %v386, %v385
  %v456 = vpack.c.b16 %v388, %v387
  %v457 = vpack.c.b16 %v390, %v389
  %v458 = vpack.c.b16 %v392, %v391
  %v459 = vpack.c.b16 %v394, %v393
  %v460 = vpack.c.b16 %v396, %v395
  %v461 = vpack.c.b16 %v398, %v397
  %v462 = vpack.c.b16 %v400, %v399
  %v463 = vpack.c.b16 %v402, %v401
  %v464 = vpack.c.b16 %v404, %v403
  %v465 = vpack.c.b16 %v406, %v405
  %v466 = vpack.c.b16 %v408, %v407
  %v467 = vpack.c.b16 %v410, %v409
  %v468 = vpack.c.b16 %v412, %v411
  %v469 = vpack.c.b16 %v414, %v413
  %v470 = vpack.c.b16 %v416, %v415
  %v471 = vpack.c.b16 %v418, %v417
  %v472 = vpack.c.b16 %v420, %v419
  %v473 = vpack.c.b16 %v422, %v421
  %v474 = vpack.c.b16 %v424, %v423
  %v475 = vpack.c.b16 %v426, %v425
  %v476 = vpack.c.b16 %v428, %v427
  %525 = vmatpush.bf16.msra.mxu0 %v436
  %526 = vmatpush.bf16.msra.mxu0 %v435
  %527 = vmatpush.bf16.msra.mxu0 %v434
  %528 = vmatpush.bf16.msra.mxu0 %v433
  %529 = vmatpush.bf16.msra.mxu0 %v432
  %530 = vmatpush.bf16.msra.mxu0 %v431
  %531 = vmatpush.bf16.msra.mxu0 %v430
  %532 = vmatpush.bf16.msra.mxu0 %v429
  %533 = vmatmul.bf16.gmra.mxu0 %v230
  %v534 = vpop.f32.mrf.mxu0
  %v535 = vadd.f32 %v236, %v534
  %v536 = vpop.f32.mrf.mxu0
  %537 = vdwg.mxu0
  %538 = vmatpush.bf16.msra.mxu0 %v444
  %539 = vmatpush.bf16.msra.mxu0 %v443
  %540 = vmatpush.bf16.msra.mxu0 %v442
  %541 = vmatpush.bf16.msra.mxu0 %v441
  %542 = vmatpush.bf16.msra.mxu0 %v440
  %543 = vmatpush.bf16.msra.mxu0 %v439
  %544 = vmatpush.bf16.msra.mxu0 %v438
  %545 = vmatpush.bf16.msra.mxu0 %v437
  %546 = vmatmul.bf16.gmra.mxu0 %v231
  %v547 = vpop.f32.mrf.mxu0
  %v548 = vadd.f32 %v535, %v547
  %v549 = vpop.f32.mrf.mxu0
  %550 = vdwg.mxu0
  %551 = vmatpush.bf16.msra.mxu0 %v452
  %552 = vmatpush.bf16.msra.mxu0 %v451
  %553 = vmatpush.bf16.msra.mxu0 %v450
  %554 = vmatpush.bf16.msra.mxu0 %v449
  %555 = vmatpush.bf16.msra.mxu0 %v448
  %556 = vmatpush.bf16.msra.mxu0 %v447
  %557 = vmatpush.bf16.msra.mxu0 %v446
  %558 = vmatpush.bf16.msra.mxu0 %v445
  %559 = vmatmul.bf16.gmra.mxu0 %v232
  %v560 = vpop.f32.mrf.mxu0
  %v561 = vadd.f32 %v548, %v560
  %v562 = vpop.f32.mrf.mxu0
  %563 = vdwg.mxu0
  %564 = vmatpush.bf16.msra.mxu0 %v460
  %565 = vmatpush.bf16.msra.mxu0 %v459
  %566 = vmatpush.bf16.msra.mxu0 %v458
  %567 = vmatpush.bf16.msra.mxu0 %v457
  %568 = vmatpush.bf16.msra.mxu0 %v456
  %569 = vmatpush.bf16.msra.mxu0 %v455
  %570 = vmatpush.bf16.msra.mxu0 %v454
  %571 = vmatpush.bf16.msra.mxu0 %v453
  %572 = vmatmul.bf16.gmra.mxu0 %v233
  %v573 = vpop.f32.mrf.mxu0
  %v574 = vadd.f32 %v561, %v573
  %v575 = vpop.f32.mrf.mxu0
  %576 = vdwg.mxu0
  %577 = vmatpush.bf16.msra.mxu0 %v468
  %578 = vmatpush.bf16.msra.mxu0 %v467
  %579 = vmatpush.bf16.msra.mxu0 %v466
  %580 = vmatpush.bf16.msra.mxu0 %v465
  %581 = vmatpush.bf16.msra.mxu0 %v464
  %582 = vmatpush.bf16.msra.mxu0 %v463
  %583 = vmatpush.bf16.msra.mxu0 %v462
  %584 = vmatpush.bf16.msra.mxu0 %v461
  %585 = vmatmul.bf16.gmra.mxu0 %v234
  %v586 = vpop.f32.mrf.mxu0
  %v587 = vadd.f32 %v574, %v586
  %v588 = vpop.f32.mrf.mxu0
  %589 = vdwg.mxu0
  %590 = vmatpush.bf16.msra.mxu0 %v476
  %591 = vmatpush.bf16.msra.mxu0 %v475
  %592 = vmatpush.bf16.msra.mxu0 %v474
  %593 = vmatpush.bf16.msra.mxu0 %v473
  %594 = vmatpush.bf16.msra.mxu0 %v472
  %595 = vmatpush.bf16.msra.mxu0 %v471
  %596 = vmatpush.bf16.msra.mxu0 %v470
  %597 = vmatpush.bf16.msra.mxu0 %v469
  %598 = vmatmul.bf16.gmra.mxu0 %v235
  %v599 = vpop.f32.mrf.mxu0
  %v600 = vadd.f32 %v587, %v599
  %v601 = vpop.f32.mrf.mxu0
  %602 = vdwg.mxu0
  %s603 = scalar_lea.vmem %s6, 384
  %v604 = vld [vmem:[%s603] sm:$0xf]
  %v605 = vld [vmem:[%s603 + $0x4] sm:$0xf]
  %v606 = vld [vmem:[%s603 + $0x8] sm:$0xf]
  %v607 = vld [vmem:[%s603 + $0xc] sm:$0xf]
  %v608 = vld [vmem:[%s603 + $0x10] sm:$0xf]
  %v609 = vld [vmem:[%s603 + $0x14] sm:$0xf]
  %v610 = vld [vmem:[%s603 + $0x18] sm:$0xf]
  %v611 = vld [vmem:[%s603 + $0x1c] sm:$0xf]
  %v612 = vld [vmem:[%s603 + $0x20] sm:$0xf]
  %v613 = vld [vmem:[%s603 + $0x24] sm:$0xf]
  %v614 = vld [vmem:[%s603 + $0x28] sm:$0xf]
  %v615 = vld [vmem:[%s603 + $0x2c] sm:$0xf]
  %v616 = vld [vmem:[%s603 + $0x30] sm:$0xf]
  %v617 = vld [vmem:[%s603 + $0x34] sm:$0xf]
  %v618 = vld [vmem:[%s603 + $0x38] sm:$0xf]
  %v619 = vld [vmem:[%s603 + $0x3c] sm:$0xf]
  %v620 = vld [vmem:[%s603 + $0x40] sm:$0xf]
  %v621 = vld [vmem:[%s603 + $0x44] sm:$0xf]
  %v622 = vld [vmem:[%s603 + $0x48] sm:$0xf]
  %v623 = vld [vmem:[%s603 + $0x4c] sm:$0xf]
  %v624 = vld [vmem:[%s603 + $0x50] sm:$0xf]
  %v625 = vld [vmem:[%s603 + $0x54] sm:$0xf]
  %v626 = vld [vmem:[%s603 + $0x58] sm:$0xf]
  %v627 = vld [vmem:[%s603 + $0x5c] sm:$0xf]
  %v628 = vld [vmem:[%s603 + $0x60] sm:$0xf]
  %v629 = vld [vmem:[%s603 + $0x64] sm:$0xf]
  %v630 = vld [vmem:[%s603 + $0x68] sm:$0xf]
  %v631 = vld [vmem:[%s603 + $0x6c] sm:$0xf]
  %v632 = vld [vmem:[%s603 + $0x70] sm:$0xf]
  %v633 = vld [vmem:[%s603 + $0x74] sm:$0xf]
  %v634 = vld [vmem:[%s603 + $0x78] sm:$0xf]
  %v635 = vld [vmem:[%s603 + $0x7c] sm:$0xf]
  %v636 = vld [vmem:[%s603 + $0x80] sm:$0xf]
  %v637 = vld [vmem:[%s603 + $0x84] sm:$0xf]
  %v638 = vld [vmem:[%s603 + $0x88] sm:$0xf]
  %v639 = vld [vmem:[%s603 + $0x8c] sm:$0xf]
  %v640 = vld [vmem:[%s603 + $0x90] sm:$0xf]
  %v641 = vld [vmem:[%s603 + $0x94] sm:$0xf]
  %v642 = vld [vmem:[%s603 + $0x98] sm:$0xf]
  %v643 = vld [vmem:[%s603 + $0x9c] sm:$0xf]
  %v644 = vld [vmem:[%s603 + $0xa0] sm:$0xf]
  %v645 = vld [vmem:[%s603 + $0xa4] sm:$0xf]
  %v646 = vld [vmem:[%s603 + $0xa8] sm:$0xf]
  %v647 = vld [vmem:[%s603 + $0xac] sm:$0xf]
  %v648 = vld [vmem:[%s603 + $0xb0] sm:$0xf]
  %v649 = vld [vmem:[%s603 + $0xb4] sm:$0xf]
  %v650 = vld [vmem:[%s603 + $0xb8] sm:$0xf]
  %v651 = vld [vmem:[%s603 + $0xbc] sm:$0xf]
  %v652 = vld [vmem:[%s603 + $0xc0] sm:$0xf]
  %v653 = vld [vmem:[%s603 + $0xc4] sm:$0xf]
  %v654 = vld [vmem:[%s603 + $0xc8] sm:$0xf]
  %v655 = vld [vmem:[%s603 + $0xcc] sm:$0xf]
  %v656 = vld [vmem:[%s603 + $0xd0] sm:$0xf]
  %v657 = vld [vmem:[%s603 + $0xd4] sm:$0xf]
  %v658 = vld [vmem:[%s603 + $0xd8] sm:$0xf]
  %v659 = vld [vmem:[%s603 + $0xdc] sm:$0xf]
  %v660 = vld [vmem:[%s603 + $0xe0] sm:$0xf]
  %v661 = vld [vmem:[%s603 + $0xe4] sm:$0xf]
  %v662 = vld [vmem:[%s603 + $0xe8] sm:$0xf]
  %v663 = vld [vmem:[%s603 + $0xec] sm:$0xf]
  %v664 = vld [vmem:[%s603 + $0xf0] sm:$0xf]
  %v665 = vld [vmem:[%s603 + $0xf4] sm:$0xf]
  %v666 = vld [vmem:[%s603 + $0xf8] sm:$0xf]
  %v667 = vld [vmem:[%s603 + $0xfc] sm:$0xf]
  %v668 = vld [vmem:[%s603 + $0x100] sm:$0xf]
  %v669 = vld [vmem:[%s603 + $0x104] sm:$0xf]
  %v670 = vld [vmem:[%s603 + $0x108] sm:$0xf]
  %v671 = vld [vmem:[%s603 + $0x10c] sm:$0xf]
  %v672 = vld [vmem:[%s603 + $0x110] sm:$0xf]
  %v673 = vld [vmem:[%s603 + $0x114] sm:$0xf]
  %v674 = vld [vmem:[%s603 + $0x118] sm:$0xf]
  %v675 = vld [vmem:[%s603 + $0x11c] sm:$0xf]
  %v676 = vld [vmem:[%s603 + $0x120] sm:$0xf]
  %v677 = vld [vmem:[%s603 + $0x124] sm:$0xf]
  %v678 = vld [vmem:[%s603 + $0x128] sm:$0xf]
  %v679 = vld [vmem:[%s603 + $0x12c] sm:$0xf]
  %v680 = vld [vmem:[%s603 + $0x130] sm:$0xf]
  %v681 = vld [vmem:[%s603 + $0x134] sm:$0xf]
  %v682 = vld [vmem:[%s603 + $0x138] sm:$0xf]
  %v683 = vld [vmem:[%s603 + $0x13c] sm:$0xf]
  %v684 = vld [vmem:[%s603 + $0x140] sm:$0xf]
  %v685 = vld [vmem:[%s603 + $0x144] sm:$0xf]
  %v686 = vld [vmem:[%s603 + $0x148] sm:$0xf]
  %v687 = vld [vmem:[%s603 + $0x14c] sm:$0xf]
  %v688 = vld [vmem:[%s603 + $0x150] sm:$0xf]
  %v689 = vld [vmem:[%s603 + $0x154] sm:$0xf]
  %v690 = vld [vmem:[%s603 + $0x158] sm:$0xf]
  %v691 = vld [vmem:[%s603 + $0x15c] sm:$0xf]
  %v692 = vld [vmem:[%s603 + $0x160] sm:$0xf]
  %v693 = vld [vmem:[%s603 + $0x164] sm:$0xf]
  %v694 = vld [vmem:[%s603 + $0x168] sm:$0xf]
  %v695 = vld [vmem:[%s603 + $0x16c] sm:$0xf]
  %v696 = vld [vmem:[%s603 + $0x170] sm:$0xf]
  %v697 = vld [vmem:[%s603 + $0x174] sm:$0xf]
  %v698 = vld [vmem:[%s603 + $0x178] sm:$0xf]
  %v699 = vld [vmem:[%s603 + $0x17c] sm:$0xf]
  %v700 = vld [vmem:[%s5 + $0x34] sm:$0x1]
  %v701 = vld [vmem:[%s4] sm:$0xff]
  %v702 = vld [vmem:[%s4 + $0x8] sm:$0xff]
  %v703 = vld [vmem:[%s4 + $0x10] sm:$0xff]
  %707 = vst [vmem:[#allocation1] ss:$2 sm:$0xff] %v701
  %s708 = scalar_lea.vmem [#allocation1], 16
  %709 = vst [vmem:[%s708] ss:$2 sm:$0xff] %v702
  %s710 = scalar_lea.vmem [#allocation1], 32
  %711 = vst [vmem:[%s710] ss:$2 sm:$0xff] %v703
  %v712 = vld.sshfl [vmem:[#allocation1] sm:$0xff pattern:$0x75316420]
  %v713 = vld.sshfl [vmem:[#allocation1 + $0x8] sm:$0xff pattern:$0x75316420]
  %v714 = vld.sshfl [vmem:[#allocation1 + $0x10] sm:$0xff pattern:$0x75316420]
  %v715 = vld.sshfl [vmem:[#allocation1 + $0x18] sm:$0xff pattern:$0x75316420]
  %v716 = vld.sshfl [vmem:[#allocation1 + $0x20] sm:$0xff pattern:$0x75316420]
  %v717 = vld.sshfl [vmem:[#allocation1 + $0x28] sm:$0xff pattern:$0x75316420]
  %v724 = vpack.c.bf16 %v712, %v712
  %v725 = vpack.c.bf16 %v713, %v713
  %v726 = vpack.c.bf16 %v714, %v714
  %v727 = vpack.c.bf16 %v715, %v715
  %v728 = vpack.c.bf16 %v716, %v716
  %v729 = vpack.c.bf16 %v717, %v717
  %v730 = vperm.slane %v700, 0
  %v827 = vunpack.c.l.b16 %v604
  %v828 = vunpack.c.l.b16 %v605
  %v829 = vunpack.c.l.b16 %v606
  %v830 = vunpack.c.l.b16 %v607
  %v831 = vunpack.c.l.b16 %v608
  %v832 = vunpack.c.l.b16 %v609
  %v833 = vunpack.c.l.b16 %v610
  %v834 = vunpack.c.l.b16 %v611
  %v835 = vunpack.c.l.b16 %v612
  %v836 = vunpack.c.l.b16 %v613
  %v837 = vunpack.c.l.b16 %v614
  %v838 = vunpack.c.l.b16 %v615
  %v839 = vunpack.c.l.b16 %v616
  %v840 = vunpack.c.l.b16 %v617
  %v841 = vunpack.c.l.b16 %v618
  %v842 = vunpack.c.l.b16 %v619
  %v843 = vunpack.c.l.b16 %v620
  %v844 = vunpack.c.l.b16 %v621
  %v845 = vunpack.c.l.b16 %v622
  %v846 = vunpack.c.l.b16 %v623
  %v847 = vunpack.c.l.b16 %v624
  %v848 = vunpack.c.l.b16 %v625
  %v849 = vunpack.c.l.b16 %v626
  %v850 = vunpack.c.l.b16 %v627
  %v851 = vunpack.c.l.b16 %v628
  %v852 = vunpack.c.l.b16 %v629
  %v853 = vunpack.c.l.b16 %v630
  %v854 = vunpack.c.l.b16 %v631
  %v855 = vunpack.c.l.b16 %v632
  %v856 = vunpack.c.l.b16 %v633
  %v857 = vunpack.c.l.b16 %v634
  %v858 = vunpack.c.l.b16 %v635
  %v859 = vunpack.c.l.b16 %v636
  %v860 = vunpack.c.l.b16 %v637
  %v861 = vunpack.c.l.b16 %v638
  %v862 = vunpack.c.l.b16 %v639
  %v863 = vunpack.c.l.b16 %v640
  %v864 = vunpack.c.l.b16 %v641
  %v865 = vunpack.c.l.b16 %v642
  %v866 = vunpack.c.l.b16 %v643
  %v867 = vunpack.c.l.b16 %v644
  %v868 = vunpack.c.l.b16 %v645
  %v869 = vunpack.c.l.b16 %v646
  %v870 = vunpack.c.l.b16 %v647
  %v871 = vunpack.c.l.b16 %v648
  %v872 = vunpack.c.l.b16 %v649
  %v873 = vunpack.c.l.b16 %v650
  %v874 = vunpack.c.l.b16 %v651
  %v875 = vunpack.c.l.b16 %v652
  %v876 = vunpack.c.l.b16 %v653
  %v877 = vunpack.c.l.b16 %v654
  %v878 = vunpack.c.l.b16 %v655
  %v879 = vunpack.c.l.b16 %v656
  %v880 = vunpack.c.l.b16 %v657
  %v881 = vunpack.c.l.b16 %v658
  %v882 = vunpack.c.l.b16 %v659
  %v883 = vunpack.c.l.b16 %v660
  %v884 = vunpack.c.l.b16 %v661
  %v885 = vunpack.c.l.b16 %v662
  %v886 = vunpack.c.l.b16 %v663
  %v887 = vunpack.c.l.b16 %v664
  %v888 = vunpack.c.l.b16 %v665
  %v889 = vunpack.c.l.b16 %v666
  %v890 = vunpack.c.l.b16 %v667
  %v891 = vunpack.c.l.b16 %v668
  %v892 = vunpack.c.l.b16 %v669
  %v893 = vunpack.c.l.b16 %v670
  %v894 = vunpack.c.l.b16 %v671
  %v895 = vunpack.c.l.b16 %v672
  %v896 = vunpack.c.l.b16 %v673
  %v897 = vunpack.c.l.b16 %v674
  %v898 = vunpack.c.l.b16 %v675
  %v899 = vunpack.c.l.b16 %v676
  %v900 = vunpack.c.l.b16 %v677
  %v901 = vunpack.c.l.b16 %v678
  %v902 = vunpack.c.l.b16 %v679
  %v903 = vunpack.c.l.b16 %v680
  %v904 = vunpack.c.l.b16 %v681
  %v905 = vunpack.c.l.b16 %v682
  %v906 = vunpack.c.l.b16 %v683
  %v907 = vunpack.c.l.b16 %v684
  %v908 = vunpack.c.l.b16 %v685
  %v909 = vunpack.c.l.b16 %v686
  %v910 = vunpack.c.l.b16 %v687
  %v911 = vunpack.c.l.b16 %v688
  %v912 = vunpack.c.l.b16 %v689
  %v913 = vunpack.c.l.b16 %v690
  %v914 = vunpack.c.l.b16 %v691
  %v915 = vunpack.c.l.b16 %v692
  %v916 = vunpack.c.l.b16 %v693
  %v917 = vunpack.c.l.b16 %v694
  %v918 = vunpack.c.l.b16 %v695
  %v919 = vunpack.c.l.b16 %v696
  %v920 = vunpack.c.l.b16 %v697
  %v921 = vunpack.c.l.b16 %v698
  %v922 = vunpack.c.l.b16 %v699
  %v923 = vpack.c.b16 %v828, %v827
  %v924 = vpack.c.b16 %v830, %v829
  %v925 = vpack.c.b16 %v832, %v831
  %v926 = vpack.c.b16 %v834, %v833
  %v927 = vpack.c.b16 %v836, %v835
  %v928 = vpack.c.b16 %v838, %v837
  %v929 = vpack.c.b16 %v840, %v839
  %v930 = vpack.c.b16 %v842, %v841
  %v931 = vpack.c.b16 %v844, %v843
  %v932 = vpack.c.b16 %v846, %v845
  %v933 = vpack.c.b16 %v848, %v847
  %v934 = vpack.c.b16 %v850, %v849
  %v935 = vpack.c.b16 %v852, %v851
  %v936 = vpack.c.b16 %v854, %v853
  %v937 = vpack.c.b16 %v856, %v855
  %v938 = vpack.c.b16 %v858, %v857
  %v939 = vpack.c.b16 %v860, %v859
  %v940 = vpack.c.b16 %v862, %v861
  %v941 = vpack.c.b16 %v864, %v863
  %v942 = vpack.c.b16 %v866, %v865
  %v943 = vpack.c.b16 %v868, %v867
  %v944 = vpack.c.b16 %v870, %v869
  %v945 = vpack.c.b16 %v872, %v871
  %v946 = vpack.c.b16 %v874, %v873
  %v947 = vpack.c.b16 %v876, %v875
  %v948 = vpack.c.b16 %v878, %v877
  %v949 = vpack.c.b16 %v880, %v879
  %v950 = vpack.c.b16 %v882, %v881
  %v951 = vpack.c.b16 %v884, %v883
  %v952 = vpack.c.b16 %v886, %v885
  %v953 = vpack.c.b16 %v888, %v887
  %v954 = vpack.c.b16 %v890, %v889
  %v955 = vpack.c.b16 %v892, %v891
  %v956 = vpack.c.b16 %v894, %v893
  %v957 = vpack.c.b16 %v896, %v895
  %v958 = vpack.c.b16 %v898, %v897
  %v959 = vpack.c.b16 %v900, %v899
  %v960 = vpack.c.b16 %v902, %v901
  %v961 = vpack.c.b16 %v904, %v903
  %v962 = vpack.c.b16 %v906, %v905
  %v963 = vpack.c.b16 %v908, %v907
  %v964 = vpack.c.b16 %v910, %v909
  %v965 = vpack.c.b16 %v912, %v911
  %v966 = vpack.c.b16 %v914, %v913
  %v967 = vpack.c.b16 %v916, %v915
  %v968 = vpack.c.b16 %v918, %v917
  %v969 = vpack.c.b16 %v920, %v919
  %v970 = vpack.c.b16 %v922, %v921
  %1019 = vmatpush.bf16.msra.mxu0 %v930
  %1020 = vmatpush.bf16.msra.mxu0 %v929
  %1021 = vmatpush.bf16.msra.mxu0 %v928
  %1022 = vmatpush.bf16.msra.mxu0 %v927
  %1023 = vmatpush.bf16.msra.mxu0 %v926
  %1024 = vmatpush.bf16.msra.mxu0 %v925
  %1025 = vmatpush.bf16.msra.mxu0 %v924
  %1026 = vmatpush.bf16.msra.mxu0 %v923
  %1027 = vmatmul.bf16.gmra.mxu0 %v724
  %v1028 = vpop.f32.mrf.mxu0
  %v1029 = vadd.f32 %v730, %v1028
  %v1030 = vpop.f32.mrf.mxu0
  %1031 = vdwg.mxu0
  %1032 = vmatpush.bf16.msra.mxu0 %v938
  %1033 = vmatpush.bf16.msra.mxu0 %v937
  %1034 = vmatpush.bf16.msra.mxu0 %v936
  %1035 = vmatpush.bf16.msra.mxu0 %v935
  %1036 = vmatpush.bf16.msra.mxu0 %v934
  %1037 = vmatpush.bf16.msra.mxu0 %v933
  %1038 = vmatpush.bf16.msra.mxu0 %v932
  %1039 = vmatpush.bf16.msra.mxu0 %v931
  %1040 = vmatmul.bf16.gmra.mxu0 %v725
  %v1041 = vpop.f32.mrf.mxu0
  %v1042 = vadd.f32 %v1029, %v1041
  %v1043 = vpop.f32.mrf.mxu0
  %1044 = vdwg.mxu0
  %1045 = vmatpush.bf16.msra.mxu0 %v946
  %1046 = vmatpush.bf16.msra.mxu0 %v945
  %1047 = vmatpush.bf16.msra.mxu0 %v944
  %1048 = vmatpush.bf16.msra.mxu0 %v943
  %1049 = vmatpush.bf16.msra.mxu0 %v942
  %1050 = vmatpush.bf16.msra.mxu0 %v941
  %1051 = vmatpush.bf16.msra.mxu0 %v940
  %1052 = vmatpush.bf16.msra.mxu0 %v939
  %1053 = vmatmul.bf16.gmra.mxu0 %v726
  %v1054 = vpop.f32.mrf.mxu0
  %v1055 = vadd.f32 %v1042, %v1054
  %v1056 = vpop.f32.mrf.mxu0
  %1057 = vdwg.mxu0
  %1058 = vmatpush.bf16.msra.mxu0 %v954
  %1059 = vmatpush.bf16.msra.mxu0 %v953
  %1060 = vmatpush.bf16.msra.mxu0 %v952
  %1061 = vmatpush.bf16.msra.mxu0 %v951
  %1062 = vmatpush.bf16.msra.mxu0 %v950
  %1063 = vmatpush.bf16.msra.mxu0 %v949
  %1064 = vmatpush.bf16.msra.mxu0 %v948
  %1065 = vmatpush.bf16.msra.mxu0 %v947
  %1066 = vmatmul.bf16.gmra.mxu0 %v727
  %v1067 = vpop.f32.mrf.mxu0
  %v1068 = vadd.f32 %v1055, %v1067
  %v1069 = vpop.f32.mrf.mxu0
  %1070 = vdwg.mxu0
  %1071 = vmatpush.bf16.msra.mxu0 %v962
  %1072 = vmatpush.bf16.msra.mxu0 %v961
  %1073 = vmatpush.bf16.msra.mxu0 %v960
  %1074 = vmatpush.bf16.msra.mxu0 %v959
  %1075 = vmatpush.bf16.msra.mxu0 %v958
  %1076 = vmatpush.bf16.msra.mxu0 %v957
  %1077 = vmatpush.bf16.msra.mxu0 %v956
  %1078 = vmatpush.bf16.msra.mxu0 %v955
  %1079 = vmatmul.bf16.gmra.mxu0 %v728
  %v1080 = vpop.f32.mrf.mxu0
  %v1081 = vadd.f32 %v1068, %v1080
  %v1082 = vpop.f32.mrf.mxu0
  %1083 = vdwg.mxu0
  %1084 = vmatpush.bf16.msra.mxu0 %v970
  %1085 = vmatpush.bf16.msra.mxu0 %v969
  %1086 = vmatpush.bf16.msra.mxu0 %v968
  %1087 = vmatpush.bf16.msra.mxu0 %v967
  %1088 = vmatpush.bf16.msra.mxu0 %v966
  %1089 = vmatpush.bf16.msra.mxu0 %v965
  %1090 = vmatpush.bf16.msra.mxu0 %v964
  %1091 = vmatpush.bf16.msra.mxu0 %v963
  %1092 = vmatmul.bf16.gmra.mxu0 %v729
  %v1093 = vpop.f32.mrf.mxu0
  %v1094 = vadd.f32 %v1081, %v1093
  %v1095 = vpop.f32.mrf.mxu0
  %1096 = vdwg.mxu0
  %v1097 = vxor.u32 %v54, 2147483648
  %v1098 = vmul.f32 %v1097, 1.442695
  %v1099 = vpow.pop %v1098
  %v1100 = vadd.f32 %v1099, 1.0
  %v1101 = vrcp.pop %v1100
  %v1102 = vmul.f32 %v1100, %v1101
  %v1103 = vsub.f32 1.0, %v1102
  %v1104 = vmul.f32 %v1101, %v1103
  %v1105 = vadd.f32 %v1101, %v1104
  %vm1106 = vweird.f32 %v1100
  %vm1107 = vweird.f32 %v1101
  %vm1108 = vmor %vm1106, %vm1107
  %v1109 = vsel %vm1108, %v1101, %v1105
  %v1110 = vand.u32 2147483647, %v1100
  %vm1111 = vcmp.eq.f32.partialorder %v1110, 8.507059e+37
  %v1112 = vand.u32 %v1100, 2147483648
  %v1113 = vor.u32 1.1754944e-38, %v1112
  %v1114 = vsel %vm1111, %v1113, %v1109
  %v1115 = vmul.f32 1.0, %v1114
  %1117 = vset.pattern.permute.xlu0 10
  %1118 = vperm.xlu0 %1117, %v1115
  %v1119 = vpop.permute.xlu0 %1118
  %v1121 = vmul.f32 %v54, %v1119
  %v1122 = vxor.u32 %v78, 2147483648
  %v1123 = vmul.f32 %v1122, 1.442695
  %v1124 = vpow.pop %v1123
  %v1125 = vadd.f32 %v1124, 1.0
  %v1126 = vrcp.pop %v1125
  %v1127 = vmul.f32 %v1125, %v1126
  %v1128 = vsub.f32 1.0, %v1127
  %v1129 = vmul.f32 %v1126, %v1128
  %v1130 = vadd.f32 %v1126, %v1129
  %vm1131 = vweird.f32 %v1125
  %vm1132 = vweird.f32 %v1126
  %vm1133 = vmor %vm1131, %vm1132
  %v1134 = vsel %vm1133, %v1126, %v1130
  %v1135 = vand.u32 2147483647, %v1125
  %vm1136 = vcmp.eq.f32.partialorder %v1135, 8.507059e+37
  %v1137 = vand.u32 %v1125, 2147483648
  %v1138 = vor.u32 1.1754944e-38, %v1137
  %v1139 = vsel %vm1136, %v1138, %v1134
  %v1140 = vmul.f32 1.0, %v1139
  %1142 = vset.pattern.permute.xlu0 10
  %1143 = vperm.xlu0 %1142, %v1140
  %v1144 = vpop.permute.xlu0 %1143
  %v1146 = vmul.f32 %v78, %v1144
  %v1147 = vxor.u32 %v107, 2147483648
  %v1148 = vmul.f32 %v1147, 1.442695
  %v1149 = vpow.pop %v1148
  %v1150 = vadd.f32 %v1149, 1.0
  %v1151 = vrcp.pop %v1150
  %v1152 = vmul.f32 %v1150, %v1151
  %v1153 = vsub.f32 1.0, %v1152
  %v1154 = vmul.f32 %v1151, %v1153
  %v1155 = vadd.f32 %v1151, %v1154
  %vm1156 = vweird.f32 %v1150
  %vm1157 = vweird.f32 %v1151
  %vm1158 = vmor %vm1156, %vm1157
  %v1159 = vsel %vm1158, %v1151, %v1155
  %v1160 = vand.u32 2147483647, %v1150
  %vm1161 = vcmp.eq.f32.partialorder %v1160, 8.507059e+37
  %v1162 = vand.u32 %v1150, 2147483648
  %v1163 = vor.u32 1.1754944e-38, %v1162
  %v1164 = vsel %vm1161, %v1163, %v1159
  %v1165 = vmul.f32 1.0, %v1164
  %1167 = vset.pattern.permute.xlu0 10
  %1168 = vperm.xlu0 %1167, %v1165
  %v1169 = vpop.permute.xlu0 %1168
  %v1171 = vmul.f32 %v107, %v1169
  %v1172 = vxor.u32 %v600, 2147483648
  %v1173 = vmul.f32 %v1172, 1.442695
  %v1174 = vpow.pop %v1173
  %v1175 = vadd.f32 %v1174, 1.0
  %v1176 = vrcp.pop %v1175
  %v1177 = vmul.f32 %v1175, %v1176
  %v1178 = vsub.f32 1.0, %v1177
  %v1179 = vmul.f32 %v1176, %v1178
  %v1180 = vadd.f32 %v1176, %v1179
  %vm1181 = vweird.f32 %v1175
  %vm1182 = vweird.f32 %v1176
  %vm1183 = vmor %vm1181, %vm1182
  %v1184 = vsel %vm1183, %v1176, %v1180
  %v1185 = vand.u32 2147483647, %v1175
  %vm1186 = vcmp.eq.f32.partialorder %v1185, 8.507059e+37
  %v1187 = vand.u32 %v1175, 2147483648
  %v1188 = vor.u32 1.1754944e-38, %v1187
  %v1189 = vsel %vm1186, %v1188, %v1184
  %v1190 = vmul.f32 1.0, %v1189
  %1192 = vset.pattern.permute.xlu0 10
  %1193 = vperm.xlu0 %1192, %v1190
  %v1194 = vpop.permute.xlu0 %1193
  %v1196 = vmul.f32 %v600, %v1194
  %v1197 = vxor.u32 %v1094, 2147483648
  %v1198 = vmul.f32 %v1197, 1.442695
  %v1199 = vpow.pop %v1198
  %v1200 = vadd.f32 %v1199, 1.0
  %v1201 = vrcp.pop %v1200
  %v1202 = vmul.f32 %v1200, %v1201
  %v1203 = vsub.f32 1.0, %v1202
  %v1204 = vmul.f32 %v1201, %v1203
  %v1205 = vadd.f32 %v1201, %v1204
  %vm1206 = vweird.f32 %v1200
  %vm1207 = vweird.f32 %v1201
  %vm1208 = vmor %vm1206, %vm1207
  %v1209 = vsel %vm1208, %v1201, %v1205
  %v1210 = vand.u32 2147483647, %v1200
  %vm1211 = vcmp.eq.f32.partialorder %v1210, 8.507059e+37
  %v1212 = vand.u32 %v1200, 2147483648
  %v1213 = vor.u32 1.1754944e-38, %v1212
  %v1214 = vsel %vm1211, %v1213, %v1209
  %v1215 = vmul.f32 1.0, %v1214
  %1217 = vset.pattern.permute.xlu0 10
  %1218 = vperm.xlu0 %1217, %v1215
  %v1219 = vpop.permute.xlu0 %1218
  %v1221 = vmul.f32 %v1094, %v1219
  %v1222 = vadd.f32 %v1121, %v1146
  %v1223 = vadd.f32 %v1222, %v1171
  %v1224 = vadd.f32 %v1196, %v1221
  %v1225 = vlaneseq
  %v1226 = vshrl.u32 %v1225, 7
  %v1227 = vlaneseq
  %v1228 = vand.u32 %v1227, 127
  %v1229 = vmul.u32 %v1226, 3
  %vm1230 = vcmp.ge.s32.totalorder %v1228, %v1229
  %v1231 = vadd.s32 %v1226, 1
  %v1232 = vmul.u32 %v1231, 3
  %vm1233 = vcmp.lt.s32.totalorder %v1228, %v1232
  %vm1234 = vmand %vm1230, %vm1233
  %v1235 = vsel %vm1234, 1.0, 0.0
  %v1236 = vmul.u32 %v1226, 2
  %vm1237 = vcmp.ge.s32.totalorder %v1228, %v1236
  %v1238 = vmul.u32 %v1231, 2
  %vm1239 = vcmp.lt.s32.totalorder %v1228, %v1238
  %vm1240 = vmand %vm1237, %vm1239
  %v1241 = vsel %vm1240, 1.0, 0.0
  %vm1242 = vcmask 31744
  %v1244 = vsel %vm1242, %v1241, 0
  %vm1246 = vcmask 1043456
  %v1248 = vsel %vm1246, %v1224, 0
  %1250 = vmatpush.msra.mxu0 0.0
  %1251 = vmatpush.msra.mxu0 0.0
  %1252 = vmatpush.msra.mxu0 0.0
  %1253 = vmatpush.msra.mxu0 0.0
  %1254 = vmatpush.msra.mxu0 0.0
  %1255 = vmatpush.msra.mxu0 0.0
  %1256 = vmatpush.msra.mxu0 0.0
  %1257 = vmatpush.msra.mxu0 0.0
  %1258 = vmatpush.msra.mxu0 0.0
  %1259 = vmatpush.msra.mxu0 0.0
  %1260 = vmatpush.msra.mxu0 0.0
  %1261 = vmatpush.msra.mxu0 0.0
  %1262 = vmatpush.msra.mxu0 0.0
  %1263 = vmatpush.msra.mxu0 0.0
  %1264 = vmatpush.msra.mxu0 0.0
  %1265 = vmatpush.msra.mxu0 %v1248
  %1266 = vmatmul.f32.gmra.mxu0 %v1244
  %v1267 = vpop.f32.mrf.mxu0
  %v1268 = vadd.f32 0.0, %v1267
  %1269 = vdwg.mxu0
  %vm1270 = vcmask 48128
  %v1272 = vsel %vm1270, %v1235, 0
  %vm1274 = vcmask 1045504
  %v1276 = vsel %vm1274, %v1223, 0
  %1278 = vmatpush.msra.mxu0 0.0
  %1279 = vmatpush.msra.mxu0 0.0
  %1280 = vmatpush.msra.mxu0 0.0
  %1281 = vmatpush.msra.mxu0 0.0
  %1282 = vmatpush.msra.mxu0 0.0
  %1283 = vmatpush.msra.mxu0 0.0
  %1284 = vmatpush.msra.mxu0 0.0
  %1285 = vmatpush.msra.mxu0 0.0
  %1286 = vmatpush.msra.mxu0 0.0
  %1287 = vmatpush.msra.mxu0 0.0
  %1288 = vmatpush.msra.mxu0 0.0
  %1289 = vmatpush.msra.mxu0 0.0
  %1290 = vmatpush.msra.mxu0 0.0
  %1291 = vmatpush.msra.mxu0 0.0
  %1292 = vmatpush.msra.mxu0 0.0
  %1293 = vmatpush.msra.mxu0 %v1276
  %1294 = vmatmul.f32.gmra.mxu0 %v1272
  %v1295 = vpop.f32.mrf.mxu0
  %v1296 = vadd.f32 %v1268, %v1295
  %1297 = vdwg.mxu0
  %v1298 = vld [vmem:[%s5 + $0x35] sm:$0x1]
  %v1299 = vperm.slane %v1298, 0
  %v1300 = vadd.f32 %v1296, %v1299
  %vm1301 = vcmask 91136
  %1302 = vst.msk [vmem:[%s7] sm:$0x3] %vm1301, %v1300
  // Predicated region
  $region30: #{attention_graph.1} parent=0 // pred_check
    _
  $region31: #{attention_graph.1} parent=0 // pred_check_branch
    %1304 = sbr.rel (0) target = $region33
  $region32: #{attention_graph.1} parent=0 // pred_region
    _
  $region33: #{attention_graph.1} parent=0 // pred_fallthru
    _
  // Predicated region
  $region34: #{attention_graph.1} parent=0 // pred_check
    _
  $region35: #{attention_graph.1} parent=0 // pred_check_branch
    %1306 = sbr.rel (0) target = $region37
  $region36: #{attention_graph.1} parent=0 // pred_region
    _
  $region37: #{attention_graph.1} parent=0 // pred_fallthru
    _

</llo_original>
